<compile_context>
chip_gen: v6e
topology: v6e:2x2x1
jax: 0.10.0
libtpu: 0.0.40
codegen_flags: <defaults>
</compile_context>

<pallas_src>
import functools

import jax
import jax.numpy as jnp
import numpy as np
from jax.experimental import pallas as pl
from jax.experimental.pallas import tpu as pltpu

_LANES = 128
_SUBLANES = 8
_MAX_BLOCK_ROWS = 1024     # 2 * 1024 * 128 * 4B = 1 MiB per block (double-buffered: 2 MiB)
_NUM_CORE_SPLITS = 2       # partial sums for v7x megacore; runs sequentially on 1-TC chips


def _round_up(x, m):
    return ((x + m - 1) // m) * m


def occlusion_kernel(diff_ref, out_ref, *, gamma, inv_num_graphs, num_edges,
                     block_rows, blocks_per_core):
    """diff_ref: [2, block_rows, 128] f32 (dx / dy planes); out_ref: [1, 8, 128] f32."""
    c = pl.program_id(0)
    j = pl.program_id(1)

    @pl.when(j == 0)
    def _init():
        out_ref[...] = jnp.zeros_like(out_ref)

    dx = diff_ref[0]                                   # [block_rows, 128]
    dy = diff_ref[1]
    dist = jnp.sqrt(dx * dx + dy * dy)                 # ||end - start||, pure VPU + EUP
    occ = jnp.exp(dist * (-gamma))                     # [block_rows, 128]

    # Mask padded tail elements (flat edge index >= num_edges).
    block_idx = c * blocks_per_core + j
    row_ids = jax.lax.broadcasted_iota(jnp.int32, (block_rows, _LANES), 0)
    lane_ids = jax.lax.broadcasted_iota(jnp.int32, (block_rows, _LANES), 1)
    flat = (block_idx * block_rows + row_ids) * _LANES + lane_ids
    occ = jnp.where(flat < num_edges, occ, 0.0)

    # Accumulate per-(sublane, lane) partial sums into the resident output block
    # (vreg-wise adds only; the scalar reduce happens once in the wrapper).
    partial = jnp.sum(occ.reshape(block_rows // _SUBLANES, _SUBLANES, _LANES), axis=0)
    out_ref[...] += partial[None]

    @pl.when(j == pl.num_programs(1) - 1)
    def _finalize():
        # Fold the mean over graphs into a compile-time scale of the partial sum.
        out_ref[...] *= inv_num_graphs


def occlusion_forward(node_pos, full_edge_index, batch_vec=None, *, gamma=1.0,
                      num_graphs=None):
    """node_pos: [N, D=2] f32, full_edge_index: [2, E] i32.

    num_graphs must be a static Python int (== max graph id + 1).  batch_vec is
    accepted for interface parity but unused: scatter-sum + mean collapses to
    sum(occ) / num_graphs when all edge graph-ids lie in [0, num_graphs).
    """
    del batch_vec
    if num_graphs is None:
        raise ValueError("num_graphs must be passed as a static Python int")
    num_graphs = int(num_graphs)

    e = int(full_edge_index.shape[1])
    # Glue: gather edge endpoints (get_full_edges) and take the difference once.
    diff = (node_pos[full_edge_index[1]]
            - node_pos[full_edge_index[0]]).astype(jnp.float32)         # [E, 2]

    # Lane-dense retiling: edges map to the 128-lane axis.
    rows = (e + _LANES - 1) // _LANES
    block_rows = min(
        _MAX_BLOCK_ROWS,
        _round_up((rows + _NUM_CORE_SPLITS - 1) // _NUM_CORE_SPLITS, _SUBLANES))
    rows_padded = _round_up(rows, block_rows * _NUM_CORE_SPLITS)
    blocks_per_core = rows_padded // (block_rows * _NUM_CORE_SPLITS)
    pad = rows_padded * _LANES - e
    diff_padded = jnp.pad(diff, ((0, pad), (0, 0)))                     # [rows_padded*128, 2]
    diffs = diff_padded.T.reshape(2, rows_padded, _LANES)               # [2, rows_padded, 128]

    kernel = functools.partial(
        occlusion_kernel,
        gamma=float(gamma),
        inv_num_graphs=1.0 / float(num_graphs),
        num_edges=e,
        block_rows=block_rows,
        blocks_per_core=blocks_per_core,
    )

    partials = pl.pallas_call(
        kernel,
        out_shape=jax.ShapeDtypeStruct((_NUM_CORE_SPLITS, _SUBLANES, _LANES),
                                       jnp.float32),
        grid=(_NUM_CORE_SPLITS, blocks_per_core),
        in_specs=[
            pl.BlockSpec((2, block_rows, _LANES),
                         lambda c, j: (0, c * blocks_per_core + j, 0)),
        ],
        out_specs=pl.BlockSpec((1, _SUBLANES, _LANES), lambda c, j: (c, 0, 0)),
        compiler_params=pltpu.CompilerParams(
            dimension_semantics=("parallel", "arbitrary")),
    )(diffs)

    # Tiny epilogue: add the per-core partial sums (already scaled by 1/G).
    return jnp.sum(partials)


def occlusion_ref(node_pos, full_edge_index, batch_vec, *, gamma=1.0, num_graphs=2):
    start = node_pos[full_edge_index[0]]
    end = node_pos[full_edge_index[1]]
    eu = jnp.linalg.norm(end - start, axis=1)
    occ = jnp.exp(-gamma * eu)
    seg = batch_vec[full_edge_index[0]]
    gsum = jax.ops.segment_sum(occ, seg, num_segments=num_graphs)
    return jnp.mean(gsum)


if __name__ == "__main__":
    # Small synthetic batch: 2 graphs x 8 nodes, 2-D layout coordinates,
    # full (complete, directed, no self-loop) edge set per graph.
    num_graphs = 2
    nodes_per_graph = 8
    n_nodes = num_graphs * nodes_per_graph

    key = jax.random.PRNGKey(0)
    node_pos = jax.random.normal(key, (n_nodes, 2), dtype=jnp.float32)

    edges = []
    batch_list = []
    for g in range(num_graphs):
        off = g * nodes_per_graph
        for i in range(nodes_per_graph):
            batch_list.append(g)
            for j in range(nodes_per_graph):
                if i != j:
                    edges.append((off + i, off + j))
    full_edge_index = jnp.asarray(np.asarray(edges, dtype=np.int32).T)  # [2, E]
    batch_vec = jnp.asarray(np.asarray(batch_list, dtype=np.int32))     # [N]

    out = occlusion_forward(node_pos, full_edge_index, batch_vec,
                            gamma=1.0, num_graphs=num_graphs)
    out = jax.block_until_ready(out)

    ref = occlusion_ref(node_pos, full_edge_index, batch_vec,
                        gamma=1.0, num_graphs=num_graphs)
    np.testing.assert_allclose(np.asarray(out), np.asarray(ref), rtol=1e-5, atol=1e-5)

    print("KERNEL_OK")
</pallas_src>

<mosaic_0001>
module attributes {stable_mosaic.version = 11 : i64} {
  func.func @occlusion_kernel(%arg0: i32, %arg1: i32, %arg2: memref<2x8x128xf32, #tpu.memory_space<vmem>>, %arg3: memref<1x8x128xf32, #tpu.memory_space<vmem>>) attributes {dimension_semantics = [#tpu.dimension_semantics<parallel>, #tpu.dimension_semantics<arbitrary>], iteration_bounds = array<i64: 2, 1>, scalar_prefetch = 0 : i64, scratch_operands = 0 : i64, tpu.core_type = #tpu.core_type<tc>, window_params = [{transform_indices = @transform_0, window_bounds = array<i64: 2, 8, 128>}, {transform_indices = @transform_1, window_bounds = array<i64: 1, 8, 128>}]} {
    %c0_i32 = arith.constant 0 : i32
    %0 = arith.cmpi eq, %arg1, %c0_i32 : i32
    %1 = arith.extui %0 : i1 to i32
    %c0_i32_0 = arith.constant 0 : i32
    %2 = arith.cmpi ne, %1, %c0_i32_0 : i32
    scf.if %2 {
      %cst_15 = arith.constant 0.000000e+00 : f32
      %37 = vector.broadcast %cst_15 : f32 to vector<1x8x128xf32>
      %c0_16 = arith.constant 0 : index
      %c0_17 = arith.constant 0 : index
      %c0_18 = arith.constant 0 : index
      %38 = vector.load %arg3[%c0_16, %c0_17, %c0_18] : memref<1x8x128xf32, #tpu.memory_space<vmem>>, vector<1x8x128xf32>
      tpu.vector_store %arg3[%c0_16, %c0_17, %c0_18], %37 {strides = array<i32>} : memref<1x8x128xf32, #tpu.memory_space<vmem>>, vector<1x8x128xf32>,
    } else {
    }
    %c0 = arith.constant 0 : index
    %c0_1 = arith.constant 0 : index
    %c0_2 = arith.constant 0 : index
    %3 = vector.load %arg2[%c0, %c0_1, %c0_2] : memref<2x8x128xf32, #tpu.memory_space<vmem>>, vector<1x8x128xf32>
    %4 = vector.shape_cast %3 : vector<1x8x128xf32> to vector<8x128xf32>
    %c1 = arith.constant 1 : index
    %c0_3 = arith.constant 0 : index
    %c0_4 = arith.constant 0 : index
    %5 = vector.load %arg2[%c1, %c0_3, %c0_4] : memref<2x8x128xf32, #tpu.memory_space<vmem>>, vector<1x8x128xf32>
    %6 = vector.shape_cast %5 : vector<1x8x128xf32> to vector<8x128xf32>
    %7 = arith.mulf %4, %4 : vector<8x128xf32>
    %8 = arith.mulf %6, %6 : vector<8x128xf32>
    %9 = arith.addf %7, %8 : vector<8x128xf32>
    %10 = math.sqrt %9 : vector<8x128xf32>
    %cst = arith.constant -1.000000e+00 : f32
    %11 = vector.broadcast %cst : f32 to vector<8x128xf32>
    %12 = arith.mulf %10, %11 : vector<8x128xf32>
    %13 = math.exp %12 : vector<8x128xf32>
    %c1_i32 = arith.constant 1 : i32
    %14 = arith.muli %arg0, %c1_i32 : i32
    %15 = arith.addi %14, %arg1 : i32
    %16 = tpu.iota {dimensions = array<i32: 0>} : vector<8x128xi32>
    %17 = tpu.iota {dimensions = array<i32: 1>} : vector<8x128xi32>
    %c8_i32 = arith.constant 8 : i32
    %18 = arith.muli %15, %c8_i32 : i32
    %19 = vector.broadcast %18 : i32 to vector<8x128xi32>
    %20 = arith.addi %19, %16 : vector<8x128xi32>
    %c128_i32 = arith.constant 128 : i32
    %21 = vector.broadcast %c128_i32 : i32 to vector<8x128xi32>
    %22 = arith.muli %20, %21 : vector<8x128xi32>
    %23 = arith.addi %22, %17 : vector<8x128xi32>
    %c112_i32 = arith.constant 112 : i32
    %24 = vector.broadcast %c112_i32 : i32 to vector<8x128xi32>
    %25 = arith.cmpi slt, %23, %24 : vector<8x128xi32>
    %cst_5 = arith.constant 0.000000e+00 : f32
    %26 = vector.broadcast %cst_5 : f32 to vector<8x128xf32>
    %27 = arith.select %25, %13, %26 : vector<8x128xi1>, vector<8x128xf32>
    %28 = vector.shape_cast %27 : vector<8x128xf32> to vector<1x8x128xf32>
    %cst_6 = arith.constant dense<0.000000e+00> : vector<8x128xf32>
    %29 = vector.multi_reduction <add>, %28, %cst_6 [0] : vector<1x8x128xf32> to vector<8x128xf32>
    %c0_7 = arith.constant 0 : index
    %c0_8 = arith.constant 0 : index
    %c0_9 = arith.constant 0 : index
    %30 = vector.load %arg3[%c0_7, %c0_8, %c0_9] : memref<1x8x128xf32, #tpu.memory_space<vmem>>, vector<1x8x128xf32>
    %31 = vector.shape_cast %29 : vector<8x128xf32> to vector<1x8x128xf32>
    %32 = arith.addf %30, %31 : vector<1x8x128xf32>
    %c0_10 = arith.constant 0 : index
    %c0_11 = arith.constant 0 : index
    %c0_12 = arith.constant 0 : index
    %33 = vector.load %arg3[%c0_10, %c0_11, %c0_12] : memref<1x8x128xf32, #tpu.memory_space<vmem>>, vector<1x8x128xf32>
    tpu.vector_store %arg3[%c0_10, %c0_11, %c0_12], %32 {strides = array<i32>} : memref<1x8x128xf32, #tpu.memory_space<vmem>>, vector<1x8x128xf32>,
    %c0_i32_13 = arith.constant 0 : i32
    %34 = arith.cmpi eq, %arg1, %c0_i32_13 : i32
    %35 = arith.extui %34 : i1 to i32
    %c0_i32_14 = arith.constant 0 : i32
    %36 = arith.cmpi ne, %35, %c0_i32_14 : i32
    scf.if %36 {
      %c0_15 = arith.constant 0 : index
      %c0_16 = arith.constant 0 : index
      %c0_17 = arith.constant 0 : index
      %37 = vector.load %arg3[%c0_15, %c0_16, %c0_17] : memref<1x8x128xf32, #tpu.memory_space<vmem>>, vector<1x8x128xf32>
      %cst_18 = arith.constant 5.000000e-01 : f32
      %38 = vector.broadcast %cst_18 : f32 to vector<1x8x128xf32>
      %39 = arith.mulf %37, %38 : vector<1x8x128xf32>
      %c0_19 = arith.constant 0 : index
      %c0_20 = arith.constant 0 : index
      %c0_21 = arith.constant 0 : index
      %40 = vector.load %arg3[%c0_19, %c0_20, %c0_21] : memref<1x8x128xf32, #tpu.memory_space<vmem>>, vector<1x8x128xf32>
      tpu.vector_store %arg3[%c0_19, %c0_20, %c0_21], %39 {strides = array<i32>} : memref<1x8x128xf32, #tpu.memory_space<vmem>>, vector<1x8x128xf32>,
    } else {
    }
    return
  }
  func.func @transform_0(%arg0: i32, %arg1: i32) -> (i32, i32, i32) {
    %c1_i32 = arith.constant 1 : i32
    %0 = arith.muli %arg0, %c1_i32 : i32
    %1 = arith.addi %0, %arg1 : i32
    %c0_i32 = arith.constant 0 : i32
    %c0_i32_0 = arith.constant 0 : i32
    %c0_i32_1 = arith.constant 0 : i32
    return %c0_i32, %1, %c0_i32_0 : i32, i32, i32
  }
  func.func @transform_1(%arg0: i32, %arg1: i32) -> (i32, i32, i32) {
    %c0_i32 = arith.constant 0 : i32
    %c0_i32_0 = arith.constant 0 : i32
    %c0_i32_1 = arith.constant 0 : i32
    return %arg0, %c0_i32, %c0_i32_0 : i32, i32, i32
  }
}

</mosaic_0001>

<llo_original>
// kernel: tpu_custom_call.1
$region0: #{tpu_custom_call.1}
  #allocation0 [shape = 'u32[]', space=smem, size = 0x4, offset = 0x4, fixed_abs, tag = 'smem constant byte address 0x4 - core index']
  #allocation1 [shape = 'u32[144,128]{1,0:T(1,128)}', space=vmem, size = 0x12000, scoped, tag = 'internal scratch']
  %s0 = inlined_call_operand.hbm [shape: f32[2,16,128], index: 0, kind: input, shape index: {}]
  %s1 = inlined_call_operand.hbm [shape: f32[2,8,128], index: 1, kind: output, shape index: {}]
  %s2 = sld [smem:[#allocation0]]
  $region49: #{tpu_custom_call.1} parent=0
    _
  %s4 = ssub.s32 1, %s2
  %s5 = scalar_select 0, %s4, %s2
  $region1: #{tpu_custom_call.1} parent=0
    #allocation2 [shape = 'u8[16384]{0}', space=vmem, size = 0x4000, scoped, tag = 'input window, operand 0']
    #allocation3 [shape = 's32[2]{0}', space=sflag, size = 0x8, scoped, tag = 'scoped memory for tpu_custom_call.1']
    #allocation4 [shape = 's32[2]{0}', space=sflag, size = 0x8, scoped, tag = 'scoped memory for tpu_custom_call.1']
    #allocation5 [shape = 'u8[8192]{0}', space=vmem, size = 0x2000, scoped, tag = 'output window, operand 0']
    %6 = vsyncpa [#allocation3], 0
    %s7 = scalar_lea.sflag [#allocation3], 1
    %8 = vsyncpa %s7, 0
    %9 = vsyncpa [#allocation4], 0
    %s10 = scalar_lea.sflag [#allocation4], 1
    %11 = vsyncpa %s10, 0
    loop: start=0, step=1, limit=4
    $region2: #{tpu_custom_call.1} parent=1 // loop_pre_header
      _
    $region3: #{tpu_custom_call.1} parent=1 // loop_header
      %s13 = sphi 0, %s17
      %p14 = scmp.ge.s32.totalorder %s13, 4
      %s20 = sphi 0, %s32
      %s21 = sphi 0, %s28
      %s22 = sphi 0, %s20
      %s23 = sphi 0, %s21
      %s24 = sphi 0, %s22
      %s25 = sphi 0, %s23
      %s37 = sphi 0, %s39
      %s40 = sphi 0, %s37
      %s41 = sphi 0, %s40
      %s57 = sphi 0, %s41
      %s63 = sphi 0, %s65
      %s66 = sphi 0, %s63
      %s67 = sphi 0, %s66
      %s83 = sphi 0, %s67
    $region4: #{tpu_custom_call.1} parent=1 // loop_header_branch
      %16 = sbr.rel (%p14) target = $region8
    $region5: #{tpu_custom_call.1} parent=1 // loop_body
      %s18 = ssub.s32 %s13, 1
      %s19 = ssub.s32 %s13, 2
      %s26 = sadd.s32 1, %s21
      %p27 = scmp.ge.s32.totalorder %s26, 1
      %s28 = scalar_select %p27, 0, %s26
      %s29 = sadd.s32 1, %s20
      %s30 = scalar_select %p27, %s29, %s20
      %p31 = scmp.ge.s32.totalorder %s30, 2
      %s32 = scalar_select %p31, 0, %s30
      %s33 = sadd.s32 %s20, %s21
      %s34 = sadd.s32 %s32, %s28
      %s35 = ssub.s32 %s33, %s34
      %p36 = scmp.eq.s32.totalorder %s35, 0
      %s38 = sadd.s32 %s37, 1
      %s39 = scalar_select %p36, %s37, %s38
      %p42 = pneg %p36
      %p43 = scmp.eq.s32.totalorder %s13, 1
      %p44 = por %p42, %p43
      %p45 = scmp.ne.s32.totalorder %s37, %s40
      %p46 = scmp.eq.s32.totalorder %s13, 0
      %p47 = por %p45, %p46
      %p48 = scmp.ne.s32.totalorder %s37, %s40
      %p49 = scmp.eq.s32.totalorder %s18, 1
      %p50 = por %p48, %p49
      %p51 = scmp.ne.s32.totalorder %s40, %s41
      %p52 = scmp.eq.s32.totalorder %s18, 0
      %p53 = por %p51, %p52
      %p54 = scmp.ne.s32.totalorder %s40, %s41
      %p55 = scmp.eq.s32.totalorder %s19, 1
      %p56 = por %p54, %p55
      %p58 = scmp.ne.s32.totalorder %s41, %s57
      %p59 = scmp.eq.s32.totalorder %s19, 0
      %p60 = por %p58, %p59
      %s61 = ssub.s32 %s20, %s32
      %p62 = scmp.eq.s32.totalorder %s61, 0
      %s64 = sadd.s32 %s63, 1
      %s65 = scalar_select %p62, %s63, %s64
      %p68 = pneg %p62
      %p69 = scmp.eq.s32.totalorder %s13, 1
      %p70 = por %p68, %p69
      %p71 = scmp.ne.s32.totalorder %s63, %s66
      %p72 = scmp.eq.s32.totalorder %s13, 0
      %p73 = por %p71, %p72
      %p74 = scmp.ne.s32.totalorder %s63, %s66
      %p75 = scmp.eq.s32.totalorder %s18, 1
      %p76 = por %p74, %p75
      %p77 = scmp.ne.s32.totalorder %s66, %s67
      %p78 = scmp.eq.s32.totalorder %s18, 0
      %p79 = por %p77, %p78
      %p80 = scmp.ne.s32.totalorder %s66, %s67
      %p81 = scmp.eq.s32.totalorder %s19, 1
      %p82 = por %p80, %p81
      %p84 = scmp.ne.s32.totalorder %s67, %s83
      %p85 = scmp.eq.s32.totalorder %s19, 0
      %p86 = por %p84, %p85
      %p87 = scmp.le.s32.totalorder 1, %s13
      %p88 = scmp.lt.s32.totalorder %s13, 3
      %p89 = pnand %p87, %p88
      %p90 = pneg %p89
      // Predicated region
      $region9: #{tpu_custom_call.1} parent=5 // pred_check
        _
      $region10: #{tpu_custom_call.1} parent=5 // pred_check_branch
        %92 = sbr.rel (%p89) target = $region12
      $region11: #{tpu_custom_call.1} parent=5 // pred_region
        %s93 = ssub.s32 %s13, 1
      $region12: #{tpu_custom_call.1} parent=5 // pred_fallthru
        _
      %p94 = scmp.lt.s32.totalorder %s13, 2
      // Predicated region
      $region13: #{tpu_custom_call.1} parent=5 // pred_check
        %p95 = pneg %p94
      $region14: #{tpu_custom_call.1} parent=5 // pred_check_branch
        %97 = sbr.rel (%p95) target = $region16
      $region15: #{tpu_custom_call.1} parent=5 // pred_region
        // Predicated region
        $region17: #{tpu_custom_call.1} parent=15 // pred_check
          %p98 = pneg %p47
        $region18: #{tpu_custom_call.1} parent=15 // pred_check_branch
          %100 = sbr.rel (%p98) target = $region20
        $region19: #{tpu_custom_call.1} parent=15 // pred_region
          %s101 = sand.u32 %s37, 1
          %s102 = scalar_lea.sflag [#allocation3], %s101
          %s103 = sand.u32 %s37, 1
          %s104 = smul.addr %s103, 16
          %s105 = scalar_lea.vmem [#allocation2], %s104
          %s106 = sadd.s32 %s20, %s21
          %s108 = ssub.s32 256, 256
          %109 = vsyncadd %s102, %s108
          %s110 = smul.addr %s106, 128
          %s111 = scalar_lea.hbm %s0, %s110
          %s112 = sshll.u32 %s105, 4
          %s113 = int_to_ptr.vmem [resolvable:$true] %s112
          %118 = dma.hbm_to_vmem [thread:$0]  %s111, 256, %s113, %s102, 256, 128, 8
        $region20: #{tpu_custom_call.1} parent=15 // pred_fallthru
          _
      $region16: #{tpu_custom_call.1} parent=5 // pred_fallthru
        _
      %p119 = scmp.le.s32.totalorder 1, %s13
      %p120 = scmp.lt.s32.totalorder %s13, 3
      %p121 = pnand %p119, %p120
      %p122 = pneg %p121
      // Predicated region
      $region21: #{tpu_custom_call.1} parent=5 // pred_check
        _
      $region22: #{tpu_custom_call.1} parent=5 // pred_check_branch
        %124 = sbr.rel (%p121) target = $region24
      $region23: #{tpu_custom_call.1} parent=5 // pred_region
        %s125 = ssub.s32 %s13, 1
        %s126 = sand.u32 %s40, 1
        %s127 = scalar_lea.sflag [#allocation3], %s126
        %s128 = sand.u32 %s40, 1
        %s129 = smul.addr %s128, 16
        %s130 = scalar_lea.vmem [#allocation2], %s129
        // Predicated region
        $region25: #{tpu_custom_call.1} parent=23 // pred_check
          %p131 = pneg %p53
        $region26: #{tpu_custom_call.1} parent=23 // pred_check_branch
          %133 = sbr.rel (%p131) target = $region28
        $region27: #{tpu_custom_call.1} parent=23 // pred_region
          %134 = dma.done %s127, 256
        $region28: #{tpu_custom_call.1} parent=23 // pred_fallthru
          _
        %s135 = sand.u32 %s40, 1
        %s136 = scalar_lea.sflag [#allocation3], %s135
        %s137 = sand.u32 %s40, 1
        %s138 = smul.addr %s137, 16
        %s139 = scalar_lea.vmem [#allocation2], %s138
        %p140 = pneg %p53
        %p141 = pneg %p50
        %p142 = pneg %p79
        %p143 = pneg %p76
        %s144 = sand.u32 %s66, 1
        %s145 = scalar_lea.sflag [#allocation4], %s144
        %s146 = sand.u32 %s66, 1
        %s147 = smul.addr %s146, 8
        %s148 = scalar_lea.vmem [#allocation5], %s147
        %s149 = sadd.s32 %s22, %s23
        %p150 = scmp.eq.s32.totalorder %s23, 0
        // Predicated region
        $region29: #{tpu_custom_call.1} parent=23 // pred_check
          %p151 = pneg %p150
        $region30: #{tpu_custom_call.1} parent=23 // pred_check_branch
          %153 = sbr.rel (%p151) target = $region32
        $region31: #{tpu_custom_call.1} parent=23 // pred_region
          %154 = vst [vmem:[%s148] sm:$0xff] 0.0
        $region32: #{tpu_custom_call.1} parent=23 // pred_fallthru
          _
        %v155 = vld [vmem:[%s130] sm:$0xff]
        %s156 = scalar_lea.vmem %s130, 8 [#allocation2]
        %v157 = vld [vmem:[%s156] sm:$0xff]
        %v158 = vmul.f32 %v155, %v155
        %v159 = vmul.f32 %v157, %v157
        %v160 = vadd.f32 %v158, %v159
        %v161 = vrsqrt.pop %v160
        %v162 = vmul.f32 %v160, %v161
        %vm163 = vcmp.eq.f32.partialorder %v160, inf
        %v164 = vsel %vm163, %v160, %v162
        %vm165 = vcmp.eq.f32.partialorder %v160, 0.0
        %v166 = vand.u32 %v160, 2147483648
        %v167 = vsel %vm165, %v166, %v164
        %v168 = vmul.f32 %v167, -1.0
        %v169 = vmul.f32 %v168, 1.442695
        %v170 = vpow.pop %v169
        %s171 = sadd.s32 %s22, %s23
        %v172 = vlaneseq
        %v173 = vshrl.u32 %v172, 7
        %v174 = vlaneseq
        %v175 = vand.u32 %v174, 127
        %s176 = smul.u32 %s171, 8
        %v177 = vstv %s176
        %v178 = vadd.s32 %v177, %v173
        %v179 = vmul.u32 %v178, 128
        %v180 = vadd.s32 %v179, %v175
        %vm181 = vcmp.lt.s32.totalorder %v180, 112
        %v182 = vsel %vm181, %v170, 0.0
        %v183 = vadd.f32 %v182, 0.0
        %v184 = vld [vmem:[%s148] sm:$0xff]
        %v185 = vadd.f32 %v184, %v183
        %186 = vst [vmem:[%s148] sm:$0xff] %v185
        // Predicated region
        $region33: #{tpu_custom_call.1} parent=23 // pred_check
          %p187 = pneg %p150
        $region34: #{tpu_custom_call.1} parent=23 // pred_check_branch
          %189 = sbr.rel (%p187) target = $region36
        $region35: #{tpu_custom_call.1} parent=23 // pred_region
          %v190 = vld [vmem:[%s148] sm:$0xff]
          %v191 = vmul.f32 %v190, 0.5
          %192 = vst [vmem:[%s148] sm:$0xff] %v191
        $region36: #{tpu_custom_call.1} parent=23 // pred_fallthru
          _
        %s193 = sand.u32 %s66, 1
        %s194 = scalar_lea.sflag [#allocation4], %s193
        %s195 = sand.u32 %s66, 1
        %s196 = smul.addr %s195, 8
        %s197 = scalar_lea.vmem [#allocation5], %s196
        // Predicated region
        $region37: #{tpu_custom_call.1} parent=23 // pred_check
          %p198 = pneg %p76
        $region38: #{tpu_custom_call.1} parent=23 // pred_check_branch
          %200 = sbr.rel (%p198) target = $region40
        $region39: #{tpu_custom_call.1} parent=23 // pred_region
          %s202 = ssub.s32 128, 128
          %203 = vsyncadd %s194, %s202
          %s204 = smul.addr %s22, 128
          %s205 = scalar_lea.hbm %s1, %s204
          %s207 = sshll.u32 %s197, 4
          %s208 = int_to_ptr.vmem [resolvable:$true] %s207
          %210 = dma.vmem_to_hbm [thread:$0]  %s208, 128, %s205, %s194
        $region40: #{tpu_custom_call.1} parent=23 // pred_fallthru
          _
      $region24: #{tpu_custom_call.1} parent=5 // pred_fallthru
        _
      %p211 = scmp.le.s32.totalorder 2, %s13
      // Predicated region
      $region41: #{tpu_custom_call.1} parent=5 // pred_check
        %p212 = pneg %p211
      $region42: #{tpu_custom_call.1} parent=5 // pred_check_branch
        %214 = sbr.rel (%p212) target = $region44
      $region43: #{tpu_custom_call.1} parent=5 // pred_region
        %s215 = ssub.s32 %s13, 2
        // Predicated region
        $region45: #{tpu_custom_call.1} parent=43 // pred_check
          %p216 = pneg %p82
        $region46: #{tpu_custom_call.1} parent=43 // pred_check_branch
          %218 = sbr.rel (%p216) target = $region48
        $region47: #{tpu_custom_call.1} parent=43 // pred_region
          %s219 = sand.u32 %s67, 1
          %s220 = scalar_lea.sflag [#allocation4], %s219
          %s221 = sand.u32 %s67, 1
          %s222 = smul.addr %s221, 8
          %s223 = scalar_lea.vmem [#allocation5], %s222
          %224 = dma.done %s220, 128
        $region48: #{tpu_custom_call.1} parent=43 // pred_fallthru
          _
      $region44: #{tpu_custom_call.1} parent=5 // pred_fallthru
        _
    $region6: #{tpu_custom_call.1} parent=1 // loop_footer
      %s17 = sadd.s32 1, %s13
    $region7: #{tpu_custom_call.1} parent=1 // loop_footer_branch
      %12 = sbr.rel target = $region3
    $region8: #{tpu_custom_call.1} parent=1 // loop_exit
      _
    %225 = vsyncpa [#allocation3], 1
    %s226 = scalar_lea.sflag [#allocation3], 1
    %227 = vsyncpa %s226, 1
    %228 = vsyncpa [#allocation4], 1
    %s229 = scalar_lea.sflag [#allocation4], 1
    %230 = vsyncpa %s229, 1

</llo_original>
